<compile_context>
chip_gen: v5e
topology: v5e:2x2
jax: 0.10.0
libtpu: 0.0.40
codegen_flags: <defaults>
</compile_context>

<pallas_src>
import math
from functools import partial

import jax
import jax.numpy as jnp
from jax.experimental import pallas as pl
from jax.experimental.pallas import tpu as pltpu

NUM_GROUPS = 32
EPS = 1e-6
LOG2E = 1.4426950408889634


def _vmem_capacity_bytes():
    """Physical VMEM of the local chip; conservative fallback (v7x per-TC)."""
    try:
        info = pltpu.get_tpu_info()
        cap = getattr(info, "vmem_capacity_bytes", None)
        if cap:
            return int(cap)
    except Exception:
        pass
    return 64 * 1024 * 1024


def _pick_tile(n, candidates):
    """Largest candidate (multiple of 128) that divides n; 128 always divides
    the padded N, so this never falls back to the whole row."""
    for t in candidates:
        if t <= n and n % t == 0:
            return t
    return n


# --------------------------------------------------------------------------
# Kernel 1: fused GroupNorm affine + K / V 1x1-conv projections.
#   x slab:  (1, C, tn) f32  (native NCHW layout, pixels on lanes)
#   K out:   (1, C, tn) compute_dtype   (so kernel 2's score matmul is NN)
#   V out:   (1, tn, C) compute_dtype   (so the PV matmul is NN)
# Q is NOT produced here -- it is fused into kernel 2 (saves one (B,N,C)
# HBM round trip).  K and V have different output layouts, so they are kept
# as two matmuls (no concatenated-weight fusion).
# --------------------------------------------------------------------------
def _kv_proj_kernel(x_ref, scale_ref, shift_ref, wk_ref, bk_ref, wv_ref, bv_ref,
                    k_ref, v_ref, *, compute_dtype):
    # GroupNorm folded to a per-channel FMA (scale/shift are (C, 1) columns).
    h = (x_ref[0] * scale_ref[0] + shift_ref[0]).astype(compute_dtype)   # (C, tn)
    # K in (C, tn) layout: plain NN matmul Wk @ h, bias as a (C, 1) column.
    k_cn = jnp.dot(wk_ref[...], h,
                   preferred_element_type=jnp.float32) + bk_ref[...]     # (C, tn)
    # V in (tn, C) layout: transposed-LHS matmul (contract channel dim 0 of h).
    # (Verify with pl.lower_as_mlir that this lowers to a native
    #  transposed-operand vmatmul; if a vxpose shows up, transpose h once.)
    v = jax.lax.dot_general(h, wv_ref[...], (((0,), (0,)), ((), ())),
                            preferred_element_type=jnp.float32) + bv_ref[...]  # (tn, C)
    k_ref[0] = k_cn.astype(k_ref.dtype)
    v_ref[0] = v.astype(v_ref.dtype)


# --------------------------------------------------------------------------
# Kernel 2: fused Q projection + flash attention (exp2 online softmax)
#           + proj_out + residual.
#   grid = (B, N//tq, N//tk); the kv axis is the innermost "arbitrary"
#   reduction axis -- the m/l/acc/q scratch carry depends on this invariant.
#   Output is written directly in (1, C, tq) NCHW layout (lane-dense).
# --------------------------------------------------------------------------
def _flash_attn_kernel(x_ref, scale_ref, shift_ref, wq_ref, bq_ref,
                       k_ref, v_ref, wp_ref, bp_ref, o_ref,
                       q_sc, m_sc, l_sc, acc_sc,
                       *, n_valid, tk, masked):
    kv = pl.program_id(2)

    @pl.when(kv == 0)
    def _():
        # Q projection fused here (once per q-tile) from the residual x slab:
        # Wq/bq already carry the 1/sqrt(C) softmax scale and log2(e).
        h = (x_ref[0] * scale_ref[0] + shift_ref[0]).astype(q_sc.dtype)   # (C, tq)
        q = jax.lax.dot_general(h, wq_ref[...], (((0,), (0,)), ((), ())),
                                preferred_element_type=jnp.float32) + bq_ref[...]
        q_sc[...] = q.astype(q_sc.dtype)                                  # (tq, C)
        m_sc[...] = jnp.full(m_sc.shape, -jnp.inf, jnp.float32)
        l_sc[...] = jnp.zeros(l_sc.shape, jnp.float32)
        acc_sc[...] = jnp.zeros(acc_sc.shape, jnp.float32)

    # Canonical NN score matmul: (tq, C) x (C, tk) -> (tq, tk), f32 acc.
    s = jax.lax.dot_general(q_sc[...], k_ref[0], (((1,), (0,)), ((), ())),
                            preferred_element_type=jnp.float32)
    if masked:  # static (trace-time) branch: only when N was padded
        kidx = kv * tk + jax.lax.broadcasted_iota(jnp.int32, s.shape, 1)
        s = jnp.where(kidx < n_valid, s, -jnp.inf)

    m_prev = m_sc[...]
    m_new = jnp.maximum(m_prev, jnp.max(s, axis=-1, keepdims=True))
    alpha = jnp.exp2(m_prev - m_new)            # exp2 softmax (log2e in Wq)
    p = jnp.exp2(s - m_new)
    l_sc[...] = alpha * l_sc[...] + jnp.sum(p, axis=-1, keepdims=True)
    acc_sc[...] = alpha * acc_sc[...] + jnp.dot(
        p.astype(v_ref.dtype), v_ref[0], preferred_element_type=jnp.float32)
    m_sc[...] = m_new

    @pl.when(kv == pl.num_programs(2) - 1)
    def _():
        attn = (acc_sc[...] / l_sc[...]).astype(wp_ref.dtype)             # (tq, C)
        # proj_out computed directly in (C, tq) layout (lane-dense store):
        #   out[co, n] = sum_ci Wp[co, ci] * attn[n, ci]
        out_cn = jax.lax.dot_general(wp_ref[...], attn, (((1,), (1,)), ((), ())),
                                     preferred_element_type=jnp.float32)  # (C, tq)
        o_ref[0] = x_ref[0] + out_cn + bp_ref[...]     # bias is the (C,1) column


def mem_efficient_attn_block(x_nchw, params, *, compute_dtype=jnp.bfloat16):
    """x_nchw: (B, C, H, W) float32. Returns (B, C, H, W) float32."""
    B, C, H, W = x_nchw.shape
    assert C % NUM_GROUPS == 0, "GroupNorm(32) requires C % 32 == 0"
    N = H * W

    # Native NCHW layout, no transpose (free reshape).
    x_ncn = x_nchw.reshape(B, C, N).astype(jnp.float32)

    # ---- GroupNorm statistics: two-pass f32 mean/var (numerically safe),
    #      folded into per-channel scale/shift so the kernels do one FMA. ----
    cg = C // NUM_GROUPS
    xg = x_ncn.reshape(B, NUM_GROUPS, cg * N)
    mean_g = jnp.mean(xg, axis=-1)                       # (B, G)
    var_g = jnp.var(xg, axis=-1)                         # (B, G), biased (matches torch)
    inv_g = jax.lax.rsqrt(var_g + EPS)
    inv_c = jnp.repeat(inv_g, cg, axis=1)                # (B, C)
    mean_c = jnp.repeat(mean_g, cg, axis=1)              # (B, C)
    gamma = params["gamma"].astype(jnp.float32)[None, :]
    beta = params["beta"].astype(jnp.float32)[None, :]
    scale_c = (gamma * inv_c).reshape(B, C, 1)
    shift_c = (beta - mean_c * gamma * inv_c).reshape(B, C, 1)

    # ---- pad N up to a multiple of 128 (lane-dense stores, clean tiling);
    #      padded keys are masked in kernel 2, padded q rows sliced off. ----
    Np = ((N + 127) // 128) * 128
    x_p = jnp.pad(x_ncn, ((0, 0), (0, 0), (0, Np - N))) if Np != N else x_ncn

    cd = compute_dtype
    # Softmax scale (1/sqrt(C), xformers default) and log2(e) for the exp2
    # softmax, folded into the Q projection (pre-scaled q).
    q_scale = LOG2E / math.sqrt(C)
    wq_t = (params["wq"].T * q_scale).astype(cd)               # (C_in, C_out)
    bq = (params["bq"] * q_scale).reshape(1, C).astype(jnp.float32)
    wk = params["wk"].astype(cd)                               # (C_out, C_in): K = Wk @ h
    bk = params["bk"].reshape(C, 1).astype(jnp.float32)
    wv_t = params["wv"].T.astype(cd)                           # (C_in, C_out)
    bv = params["bv"].reshape(1, C).astype(jnp.float32)
    wp = params["wp"].astype(cd)                               # (C_out, C_in)
    bp = params["bp"].reshape(C, 1).astype(jnp.float32)

    # ---- chip-aware tiling / VMEM budget ----
    vmem_cap = _vmem_capacity_bytes()
    big_vmem = vmem_cap >= 100 * 1024 * 1024                   # v5e / v6e (128 MiB)
    vmem_limit = (100 if big_vmem else 48) * 1024 * 1024
    tiles = (1024, 512, 256, 128) if big_vmem else (512, 256, 128)

    tn = _pick_tile(Np, tiles)
    tq = _pick_tile(Np, tiles)
    tk = _pick_tile(Np, (512, 256, 128))                       # kv tile stays <= 512
    # Small-VMEM parts (v7x) have 2 TensorCores: ensure the parallel grid axes
    # give both cores work when B == 1 (cap tq at Np/2, keeping it 128-aligned).
    if (not big_vmem) and B == 1 and tq == Np and Np % 256 == 0:
        tq = Np // 2

    # ------------------------- kernel 1: K / V --------------------------
    nn = Np // tn
    const2 = lambda b, i: (0, 0)

    k_s, v_s = pl.pallas_call(
        partial(_kv_proj_kernel, compute_dtype=cd),
        out_shape=(jax.ShapeDtypeStruct((B, C, Np), cd),        # K in (C, N)
                   jax.ShapeDtypeStruct((B, Np, C), cd)),        # V in (N, C)
        grid=(B, nn),
        in_specs=[
            pl.BlockSpec((1, C, tn), lambda b, i: (b, 0, i)),    # x slab (NCHW)
            pl.BlockSpec((1, C, 1), lambda b, i: (b, 0, 0)),     # GN scale
            pl.BlockSpec((1, C, 1), lambda b, i: (b, 0, 0)),     # GN shift
            pl.BlockSpec((C, C), const2), pl.BlockSpec((C, 1), const2),   # Wk, bk
            pl.BlockSpec((C, C), const2), pl.BlockSpec((1, C), const2),   # Wv^T, bv
        ],
        out_specs=(pl.BlockSpec((1, C, tn), lambda b, i: (b, 0, i)),
                   pl.BlockSpec((1, tn, C), lambda b, i: (b, i, 0))),
        compiler_params=pltpu.CompilerParams(
            dimension_semantics=("parallel", "parallel"),
            vmem_limit_bytes=vmem_limit),
    )(x_p, scale_c, shift_c, wk, bk, wv_t, bv)

    # --------- kernel 2: fused Q + flash attention + proj + residual ---------
    nq, nk = Np // tq, Np // tk
    const3 = lambda b, i, j: (0, 0)

    out_p = pl.pallas_call(
        partial(_flash_attn_kernel, n_valid=N, tk=tk, masked=(Np != N)),
        out_shape=jax.ShapeDtypeStruct((B, C, Np), jnp.float32),
        grid=(B, nq, nk),
        in_specs=[
            pl.BlockSpec((1, C, tq), lambda b, i, j: (b, 0, i)),  # x slab (res + q src)
            pl.BlockSpec((1, C, 1), lambda b, i, j: (b, 0, 0)),   # GN scale
            pl.BlockSpec((1, C, 1), lambda b, i, j: (b, 0, 0)),   # GN shift
            pl.BlockSpec((C, C), const3), pl.BlockSpec((1, C), const3),   # Wq^T, bq
            pl.BlockSpec((1, C, tk), lambda b, i, j: (b, 0, j)),  # K tile (C, tk)
            pl.BlockSpec((1, tk, C), lambda b, i, j: (b, j, 0)),  # V tile (tk, C)
            pl.BlockSpec((C, C), const3), pl.BlockSpec((C, 1), const3),   # Wp, bp
        ],
        out_specs=pl.BlockSpec((1, C, tq), lambda b, i, j: (b, 0, i)),
        scratch_shapes=[
            pltpu.VMEM((tq, C), cd),            # q tile (projected at kv == 0)
            pltpu.VMEM((tq, 1), jnp.float32),   # running max m (log2 domain)
            pltpu.VMEM((tq, 1), jnp.float32),   # running denom l
            pltpu.VMEM((tq, C), jnp.float32),   # f32 accumulator
        ],
        compiler_params=pltpu.CompilerParams(
            dimension_semantics=("parallel", "parallel", "arbitrary"),
            vmem_limit_bytes=vmem_limit),
    )(x_p, scale_c, shift_c, wq_t, bq, k_s, v_s, wp, bp)

    out_ncn = out_p[:, :, :N] if Np != N else out_p
    # (B, C, N) -> (B, C, H, W): free reshape, no data movement.
    return out_ncn.reshape(B, C, H, W)


def init_params(key, C):
    ks = jax.random.split(key, 10)
    std = 1.0 / math.sqrt(C)
    return {
        "gamma": 1.0 + 0.1 * jax.random.normal(ks[0], (C,), jnp.float32),
        "beta": 0.1 * jax.random.normal(ks[1], (C,), jnp.float32),
        "wq": std * jax.random.normal(ks[2], (C, C), jnp.float32),
        "bq": 0.02 * jax.random.normal(ks[3], (C,), jnp.float32),
        "wk": std * jax.random.normal(ks[4], (C, C), jnp.float32),
        "bk": 0.02 * jax.random.normal(ks[5], (C,), jnp.float32),
        "wv": std * jax.random.normal(ks[6], (C, C), jnp.float32),
        "bv": 0.02 * jax.random.normal(ks[7], (C,), jnp.float32),
        "wp": std * jax.random.normal(ks[8], (C, C), jnp.float32),
        "bp": 0.02 * jax.random.normal(ks[9], (C,), jnp.float32),
    }


def reference(x, p):
    """Pure-JAX replica of the PyTorch forward pass (NCHW in / out)."""
    B, C, H, W = x.shape
    N = H * W
    xr = x.reshape(B, NUM_GROUPS, C // NUM_GROUPS, H, W)
    mean = xr.mean(axis=(2, 3, 4), keepdims=True)
    var = xr.var(axis=(2, 3, 4), keepdims=True)
    h = (xr - mean) / jnp.sqrt(var + EPS)
    h = h.reshape(B, C, H, W) * p["gamma"][None, :, None, None] + p["beta"][None, :, None, None]
    hb = jnp.transpose(h.reshape(B, C, N), (0, 2, 1))  # (B, N, C)
    q = hb @ p["wq"].T + p["bq"]
    k = hb @ p["wk"].T + p["bk"]
    v = hb @ p["wv"].T + p["bv"]
    s = jnp.einsum("bnc,bmc->bnm", q, k) / jnp.sqrt(jnp.float32(C))
    a = jax.nn.softmax(s, axis=-1)
    o = jnp.einsum("bnm,bmc->bnc", a, v)
    o = o @ p["wp"].T + p["bp"]
    o = jnp.transpose(o, (0, 2, 1)).reshape(B, C, H, W)
    return x + o


if __name__ == "__main__":
    key = jax.random.PRNGKey(0)
    kx, kp = jax.random.split(key)

    B, C, H, W = 2, 64, 8, 8   # C must be divisible by 32 (GroupNorm(32))
    x = jax.random.normal(kx, (B, C, H, W), jnp.float32)
    params = init_params(kp, C)

    ref = jax.block_until_ready(reference(x, params))

    # f32 compute path: tight validation of flash/online-softmax + padding mask.
    out_f32 = jax.block_until_ready(
        mem_efficient_attn_block(x, params, compute_dtype=jnp.float32))
    assert out_f32.shape == (B, C, H, W)
    max_err = float(jnp.max(jnp.abs(out_f32 - ref)))
    assert jnp.allclose(out_f32, ref, rtol=1e-4, atol=1e-4), (
        f"f32 mismatch vs reference (max abs err {max_err:.3e})")

    # Default bf16 MXU path (f32 accumulation / f32 softmax stats); loose tolerance.
    out_bf16 = jax.block_until_ready(mem_efficient_attn_block(x, params))
    assert out_bf16.shape == (B, C, H, W)
    assert jnp.allclose(out_bf16, ref, rtol=5e-2, atol=1e-1), "bf16 mismatch vs reference"

    print("KERNEL_OK")
</pallas_src>

<mosaic_0001>
module attributes {stable_mosaic.version = 11 : i64} {
  func.func @_kv_proj_kernel(%arg0: i32, %arg1: i32, %arg2: memref<1x64x128xf32, #tpu.memory_space<vmem>>, %arg3: memref<1x64x1xf32, #tpu.memory_space<vmem>>, %arg4: memref<1x64x1xf32, #tpu.memory_space<vmem>>, %arg5: memref<64x64xf32, #tpu.memory_space<vmem>>, %arg6: memref<64x1xf32, #tpu.memory_space<vmem>>, %arg7: memref<64x64xf32, #tpu.memory_space<vmem>>, %arg8: memref<1x64xf32, #tpu.memory_space<vmem>>, %arg9: memref<1x64x128xf32, #tpu.memory_space<vmem>>, %arg10: memref<1x128x64xf32, #tpu.memory_space<vmem>>) attributes {dimension_semantics = [#tpu.dimension_semantics<parallel>, #tpu.dimension_semantics<parallel>], iteration_bounds = array<i64: 2, 1>, scalar_prefetch = 0 : i64, scratch_operands = 0 : i64, tpu.core_type = #tpu.core_type<tc>, window_params = [{transform_indices = @transform_0, window_bounds = array<i64: 1, 64, 128>}, {transform_indices = @transform_1, window_bounds = array<i64: 1, 64, 1>}, {transform_indices = @transform_2, window_bounds = array<i64: 1, 64, 1>}, {pipeline_mode = #tpu.pipeline_mode<synchronous>, transform_indices = @transform_3, window_bounds = array<i64: 64, 64>}, {pipeline_mode = #tpu.pipeline_mode<synchronous>, transform_indices = @transform_4, window_bounds = array<i64: 64, 1>}, {pipeline_mode = #tpu.pipeline_mode<synchronous>, transform_indices = @transform_5, window_bounds = array<i64: 64, 64>}, {pipeline_mode = #tpu.pipeline_mode<synchronous>, transform_indices = @transform_6, window_bounds = array<i64: 1, 64>}, {transform_indices = @transform_7, window_bounds = array<i64: 1, 64, 128>}, {transform_indices = @transform_8, window_bounds = array<i64: 1, 128, 64>}]} {
    %c0 = arith.constant 0 : index
    %c0_0 = arith.constant 0 : index
    %c0_1 = arith.constant 0 : index
    %0 = vector.load %arg2[%c0, %c0_0, %c0_1] : memref<1x64x128xf32, #tpu.memory_space<vmem>>, vector<1x64x128xf32>
    %1 = vector.shape_cast %0 : vector<1x64x128xf32> to vector<64x128xf32>
    %c0_2 = arith.constant 0 : index
    %c0_3 = arith.constant 0 : index
    %c0_4 = arith.constant 0 : index
    %2 = vector.load %arg3[%c0_2, %c0_3, %c0_4] : memref<1x64x1xf32, #tpu.memory_space<vmem>>, vector<1x64x1xf32>
    %3 = vector.shape_cast %2 : vector<1x64x1xf32> to vector<64x1xf32>
    %4 = vector.broadcast %3 : vector<64x1xf32> to vector<64x128xf32>
    %5 = arith.mulf %1, %4 : vector<64x128xf32>
    %c0_5 = arith.constant 0 : index
    %c0_6 = arith.constant 0 : index
    %c0_7 = arith.constant 0 : index
    %6 = vector.load %arg4[%c0_5, %c0_6, %c0_7] : memref<1x64x1xf32, #tpu.memory_space<vmem>>, vector<1x64x1xf32>
    %7 = vector.shape_cast %6 : vector<1x64x1xf32> to vector<64x1xf32>
    %8 = vector.broadcast %7 : vector<64x1xf32> to vector<64x128xf32>
    %9 = arith.addf %5, %8 : vector<64x128xf32>
    %c0_8 = arith.constant 0 : index
    %c0_9 = arith.constant 0 : index
    %10 = vector.load %arg5[%c0_8, %c0_9] : memref<64x64xf32, #tpu.memory_space<vmem>>, vector<64x64xf32>
    %cst = arith.constant dense<0.000000e+00> : vector<64x128xf32>
    %11 = tpu.matmul %10, %9, %cst {dimension_numbers = #tpu.dot_dimension_numbers<[1], [0], [0], [1], [0, 0, 1, 1], [], []>} : vector<64x64xf32>, vector<64x128xf32>, vector<64x128xf32> -> vector<64x128xf32>
    %c0_10 = arith.constant 0 : index
    %c0_11 = arith.constant 0 : index
    %12 = vector.load %arg6[%c0_10, %c0_11] : memref<64x1xf32, #tpu.memory_space<vmem>>, vector<64x1xf32>
    %13 = vector.broadcast %12 : vector<64x1xf32> to vector<64x128xf32>
    %14 = arith.addf %11, %13 : vector<64x128xf32>
    %c0_12 = arith.constant 0 : index
    %c0_13 = arith.constant 0 : index
    %15 = vector.load %arg7[%c0_12, %c0_13] : memref<64x64xf32, #tpu.memory_space<vmem>>, vector<64x64xf32>
    %cst_14 = arith.constant dense<0.000000e+00> : vector<128x64xf32>
    %16 = tpu.matmul %9, %15, %cst_14 {dimension_numbers = #tpu.dot_dimension_numbers<[0], [0], [1], [1], [0, 1, 1, 1], [], []>} : vector<64x128xf32>, vector<64x64xf32>, vector<128x64xf32> -> vector<128x64xf32>
    %c0_15 = arith.constant 0 : index
    %c0_16 = arith.constant 0 : index
    %17 = vector.load %arg8[%c0_15, %c0_16] : memref<1x64xf32, #tpu.memory_space<vmem>>, vector<1x64xf32>
    %18 = vector.broadcast %17 : vector<1x64xf32> to vector<128x64xf32>
    %19 = arith.addf %16, %18 : vector<128x64xf32>
    %c0_17 = arith.constant 0 : index
    %c0_18 = arith.constant 0 : index
    %c0_19 = arith.constant 0 : index
    %20 = vector.load %arg9[%c0_17, %c0_18, %c0_19] : memref<1x64x128xf32, #tpu.memory_space<vmem>>, vector<1x64x128xf32>
    %21 = vector.shape_cast %20 : vector<1x64x128xf32> to vector<64x128xf32>
    %22 = vector.shape_cast %14 : vector<64x128xf32> to vector<1x64x128xf32>
    tpu.vector_store %arg9[%c0_17, %c0_18, %c0_19], %22 {strides = array<i32>} : memref<1x64x128xf32, #tpu.memory_space<vmem>>, vector<1x64x128xf32>,
    %c0_20 = arith.constant 0 : index
    %c0_21 = arith.constant 0 : index
    %c0_22 = arith.constant 0 : index
    %23 = vector.load %arg10[%c0_20, %c0_21, %c0_22] : memref<1x128x64xf32, #tpu.memory_space<vmem>>, vector<1x128x64xf32>
    %24 = vector.shape_cast %23 : vector<1x128x64xf32> to vector<128x64xf32>
    %25 = vector.shape_cast %19 : vector<128x64xf32> to vector<1x128x64xf32>
    tpu.vector_store %arg10[%c0_20, %c0_21, %c0_22], %25 {strides = array<i32>} : memref<1x128x64xf32, #tpu.memory_space<vmem>>, vector<1x128x64xf32>,
    return
  }
  func.func @transform_0(%arg0: i32, %arg1: i32) -> (i32, i32, i32) {
    %c0_i32 = arith.constant 0 : i32
    %c0_i32_0 = arith.constant 0 : i32
    return %arg0, %c0_i32, %arg1 : i32, i32, i32
  }
  func.func @transform_1(%arg0: i32, %arg1: i32) -> (i32, i32, i32) {
    %c0_i32 = arith.constant 0 : i32
    %c0_i32_0 = arith.constant 0 : i32
    %c0_i32_1 = arith.constant 0 : i32
    return %arg0, %c0_i32, %c0_i32_0 : i32, i32, i32
  }
  func.func @transform_2(%arg0: i32, %arg1: i32) -> (i32, i32, i32) {
    %c0_i32 = arith.constant 0 : i32
    %c0_i32_0 = arith.constant 0 : i32
    %c0_i32_1 = arith.constant 0 : i32
    return %arg0, %c0_i32, %c0_i32_0 : i32, i32, i32
  }
  func.func @transform_3(%arg0: i32, %arg1: i32) -> (i32, i32) {
    %c0_i32 = arith.constant 0 : i32
    %c0_i32_0 = arith.constant 0 : i32
    %c0_i32_1 = arith.constant 0 : i32
    return %c0_i32, %c0_i32_0 : i32, i32
  }
  func.func @transform_4(%arg0: i32, %arg1: i32) -> (i32, i32) {
    %c0_i32 = arith.constant 0 : i32
    %c0_i32_0 = arith.constant 0 : i32
    %c0_i32_1 = arith.constant 0 : i32
    return %c0_i32, %c0_i32_0 : i32, i32
  }
  func.func @transform_5(%arg0: i32, %arg1: i32) -> (i32, i32) {
    %c0_i32 = arith.constant 0 : i32
    %c0_i32_0 = arith.constant 0 : i32
    %c0_i32_1 = arith.constant 0 : i32
    return %c0_i32, %c0_i32_0 : i32, i32
  }
  func.func @transform_6(%arg0: i32, %arg1: i32) -> (i32, i32) {
    %c0_i32 = arith.constant 0 : i32
    %c0_i32_0 = arith.constant 0 : i32
    %c0_i32_1 = arith.constant 0 : i32
    return %c0_i32, %c0_i32_0 : i32, i32
  }
  func.func @transform_7(%arg0: i32, %arg1: i32) -> (i32, i32, i32) {
    %c0_i32 = arith.constant 0 : i32
    %c0_i32_0 = arith.constant 0 : i32
    return %arg0, %c0_i32, %arg1 : i32, i32, i32
  }
  func.func @transform_8(%arg0: i32, %arg1: i32) -> (i32, i32, i32) {
    %c0_i32 = arith.constant 0 : i32
    %c0_i32_0 = arith.constant 0 : i32
    return %arg0, %arg1, %c0_i32 : i32, i32, i32
  }
}

</mosaic_0001>

<llo_original>
// kernel: tpu_custom_call.1
$region0: #{tpu_custom_call.1}
  #allocation0 [shape = 'u32[]', space=smem, size = 0x4, offset = 0x4, fixed_abs, tag = 'smem constant byte address 0x4 - core index']
  #allocation1 [shape = 'u32[72,128]{1,0:T(1,128)}', space=vmem, size = 0x9000, scoped, tag = 'internal scratch']
  %s0 = inlined_call_operand.vmem [shape: f32[2,64,128], index: 0, kind: input, shape index: {}]
  %s1 = inlined_call_operand.vmem [shape: f32[2,64,1], index: 1, kind: input, shape index: {}]
  %s2 = inlined_call_operand.vmem [shape: f32[2,64,1], index: 2, kind: input, shape index: {}]
  %s3 = inlined_call_operand.vmem [shape: f32[64,64], index: 3, kind: input, shape index: {}]
  %s4 = inlined_call_operand.vmem [shape: f32[64,1], index: 4, kind: input, shape index: {}]
  %s5 = inlined_call_operand.vmem [shape: f32[64,64], index: 5, kind: input, shape index: {}]
  %s6 = inlined_call_operand.vmem [shape: f32[1,64], index: 6, kind: input, shape index: {}]
  %s7 = inlined_call_operand.hbm [shape: f32[2,64,128], index: 7, kind: output, shape index: {0}]
  %s8 = inlined_call_operand.vmem [shape: f32[2,128,64], index: 8, kind: output, shape index: {1}]
  %9 = xla_tuple %s7, %s8
  %s10 = sld [smem:[#allocation0]]
  $region69: #{tpu_custom_call.1} parent=0
    _
  %s12 = ssub.s32 1, %s10
  %s13 = scalar_select 0, %s12, %s10
  $region1: #{tpu_custom_call.1} parent=0
    #allocation2 [shape = 'u8[65536]{0}', space=vmem, size = 0x10000, scoped, tag = 'output window, operand 0']
    #allocation3 [shape = 's32[2]{0}', space=sflag, size = 0x8, scoped, tag = 'scoped memory for tpu_custom_call.1']
    %14 = vsyncpa [#allocation3], 0
    %s15 = scalar_lea.sflag [#allocation3], 1
    %16 = vsyncpa %s15, 0
    loop: start=0, step=1, limit=4
    $region2: #{tpu_custom_call.1} parent=1 // loop_pre_header
      _
    $region3: #{tpu_custom_call.1} parent=1 // loop_header
      %s18 = sphi 0, %s22
      %p19 = scmp.ge.s32.totalorder %s18, 4
      %s25 = sphi 0, %s37
      %s26 = sphi 0, %s33
      %s27 = sphi 0, %s25
      %s28 = sphi 0, %s26
      %s29 = sphi 0, %s27
      %s30 = sphi 0, %s28
      %s42 = sphi 0, %s44
      %s45 = sphi 0, %s42
      %s46 = sphi 0, %s45
      %s62 = sphi 0, %s46
      %s68 = sphi 0, %s70
      %s71 = sphi 0, %s68
      %s72 = sphi 0, %s71
      %s88 = sphi 0, %s72
      %s94 = sphi 0, %s96
      %s97 = sphi 0, %s94
      %s98 = sphi 0, %s97
      %s114 = sphi 0, %s98
      %s118 = sphi 0, %s118
      %s120 = sphi 0, %s118
      %s121 = sphi 0, %s120
      %s135 = sphi 0, %s121
      %s139 = sphi 0, %s139
      %s141 = sphi 0, %s139
      %s142 = sphi 0, %s141
      %s156 = sphi 0, %s142
      %s160 = sphi 0, %s160
      %s162 = sphi 0, %s160
      %s163 = sphi 0, %s162
      %s177 = sphi 0, %s163
      %s181 = sphi 0, %s181
      %s183 = sphi 0, %s181
      %s184 = sphi 0, %s183
      %s198 = sphi 0, %s184
      %s206 = sphi 0, %s208
      %s209 = sphi 0, %s206
      %s210 = sphi 0, %s209
      %s226 = sphi 0, %s210
      %s234 = sphi 0, %s236
      %s237 = sphi 0, %s234
      %s238 = sphi 0, %s237
      %s254 = sphi 0, %s238
    $region4: #{tpu_custom_call.1} parent=1 // loop_header_branch
      %21 = sbr.rel (%p19) target = $region8
    $region5: #{tpu_custom_call.1} parent=1 // loop_body
      %s23 = ssub.s32 %s18, 1
      %s24 = ssub.s32 %s18, 2
      %s31 = sadd.s32 1, %s26
      %p32 = scmp.ge.s32.totalorder %s31, 1
      %s33 = scalar_select %p32, 0, %s31
      %s34 = sadd.s32 1, %s25
      %s35 = scalar_select %p32, %s34, %s25
      %p36 = scmp.ge.s32.totalorder %s35, 2
      %s37 = scalar_select %p36, 0, %s35
      %s38 = ssub.s32 %s25, %s37
      %s39 = ssub.s32 %s26, %s33
      %s40 = sor.u32 %s38, %s39
      %p41 = scmp.eq.s32.totalorder %s40, 0
      %s43 = sadd.s32 %s42, 1
      %s44 = scalar_select %p41, %s42, %s43
      %p47 = pneg %p41
      %p48 = scmp.eq.s32.totalorder %s18, 1
      %p49 = por %p47, %p48
      %p50 = scmp.ne.s32.totalorder %s42, %s45
      %p51 = scmp.eq.s32.totalorder %s18, 0
      %p52 = por %p50, %p51
      %p53 = scmp.ne.s32.totalorder %s42, %s45
      %p54 = scmp.eq.s32.totalorder %s23, 1
      %p55 = por %p53, %p54
      %p56 = scmp.ne.s32.totalorder %s45, %s46
      %p57 = scmp.eq.s32.totalorder %s23, 0
      %p58 = por %p56, %p57
      %p59 = scmp.ne.s32.totalorder %s45, %s46
      %p60 = scmp.eq.s32.totalorder %s24, 1
      %p61 = por %p59, %p60
      %p63 = scmp.ne.s32.totalorder %s46, %s62
      %p64 = scmp.eq.s32.totalorder %s24, 0
      %p65 = por %p63, %p64
      %s66 = ssub.s32 %s25, %s37
      %p67 = scmp.eq.s32.totalorder %s66, 0
      %s69 = sadd.s32 %s68, 1
      %s70 = scalar_select %p67, %s68, %s69
      %p73 = pneg %p67
      %p74 = scmp.eq.s32.totalorder %s18, 1
      %p75 = por %p73, %p74
      %p76 = scmp.ne.s32.totalorder %s68, %s71
      %p77 = scmp.eq.s32.totalorder %s18, 0
      %p78 = por %p76, %p77
      %p79 = scmp.ne.s32.totalorder %s68, %s71
      %p80 = scmp.eq.s32.totalorder %s23, 1
      %p81 = por %p79, %p80
      %p82 = scmp.ne.s32.totalorder %s71, %s72
      %p83 = scmp.eq.s32.totalorder %s23, 0
      %p84 = por %p82, %p83
      %p85 = scmp.ne.s32.totalorder %s71, %s72
      %p86 = scmp.eq.s32.totalorder %s24, 1
      %p87 = por %p85, %p86
      %p89 = scmp.ne.s32.totalorder %s72, %s88
      %p90 = scmp.eq.s32.totalorder %s24, 0
      %p91 = por %p89, %p90
      %s92 = ssub.s32 %s25, %s37
      %p93 = scmp.eq.s32.totalorder %s92, 0
      %s95 = sadd.s32 %s94, 1
      %s96 = scalar_select %p93, %s94, %s95
      %p99 = pneg %p93
      %p100 = scmp.eq.s32.totalorder %s18, 1
      %p101 = por %p99, %p100
      %p102 = scmp.ne.s32.totalorder %s94, %s97
      %p103 = scmp.eq.s32.totalorder %s18, 0
      %p104 = por %p102, %p103
      %p105 = scmp.ne.s32.totalorder %s94, %s97
      %p106 = scmp.eq.s32.totalorder %s23, 1
      %p107 = por %p105, %p106
      %p108 = scmp.ne.s32.totalorder %s97, %s98
      %p109 = scmp.eq.s32.totalorder %s23, 0
      %p110 = por %p108, %p109
      %p111 = scmp.ne.s32.totalorder %s97, %s98
      %p112 = scmp.eq.s32.totalorder %s24, 1
      %p113 = por %p111, %p112
      %p115 = scmp.ne.s32.totalorder %s98, %s114
      %p116 = scmp.eq.s32.totalorder %s24, 0
      %p117 = por %p115, %p116
      %s119 = sadd.s32 %s118, 1
      %p122 = scmp.eq.s32.totalorder %s18, 1
      %p123 = scmp.ne.s32.totalorder %s118, %s120
      %p124 = scmp.eq.s32.totalorder %s18, 0
      %p125 = por %p123, %p124
      %p126 = scmp.ne.s32.totalorder %s118, %s120
      %p127 = scmp.eq.s32.totalorder %s23, 1
      %p128 = por %p126, %p127
      %p129 = scmp.ne.s32.totalorder %s120, %s121
      %p130 = scmp.eq.s32.totalorder %s23, 0
      %p131 = por %p129, %p130
      %p132 = scmp.ne.s32.totalorder %s120, %s121
      %p133 = scmp.eq.s32.totalorder %s24, 1
      %p134 = por %p132, %p133
      %p136 = scmp.ne.s32.totalorder %s121, %s135
      %p137 = scmp.eq.s32.totalorder %s24, 0
      %p138 = por %p136, %p137
      %s140 = sadd.s32 %s139, 1
      %p143 = scmp.eq.s32.totalorder %s18, 1
      %p144 = scmp.ne.s32.totalorder %s139, %s141
      %p145 = scmp.eq.s32.totalorder %s18, 0
      %p146 = por %p144, %p145
      %p147 = scmp.ne.s32.totalorder %s139, %s141
      %p148 = scmp.eq.s32.totalorder %s23, 1
      %p149 = por %p147, %p148
      %p150 = scmp.ne.s32.totalorder %s141, %s142
      %p151 = scmp.eq.s32.totalorder %s23, 0
      %p152 = por %p150, %p151
      %p153 = scmp.ne.s32.totalorder %s141, %s142
      %p154 = scmp.eq.s32.totalorder %s24, 1
      %p155 = por %p153, %p154
      %p157 = scmp.ne.s32.totalorder %s142, %s156
      %p158 = scmp.eq.s32.totalorder %s24, 0
      %p159 = por %p157, %p158
      %s161 = sadd.s32 %s160, 1
      %p164 = scmp.eq.s32.totalorder %s18, 1
      %p165 = scmp.ne.s32.totalorder %s160, %s162
      %p166 = scmp.eq.s32.totalorder %s18, 0
      %p167 = por %p165, %p166
      %p168 = scmp.ne.s32.totalorder %s160, %s162
      %p169 = scmp.eq.s32.totalorder %s23, 1
      %p170 = por %p168, %p169
      %p171 = scmp.ne.s32.totalorder %s162, %s163
      %p172 = scmp.eq.s32.totalorder %s23, 0
      %p173 = por %p171, %p172
      %p174 = scmp.ne.s32.totalorder %s162, %s163
      %p175 = scmp.eq.s32.totalorder %s24, 1
      %p176 = por %p174, %p175
      %p178 = scmp.ne.s32.totalorder %s163, %s177
      %p179 = scmp.eq.s32.totalorder %s24, 0
      %p180 = por %p178, %p179
      %s182 = sadd.s32 %s181, 1
      %p185 = scmp.eq.s32.totalorder %s18, 1
      %p186 = scmp.ne.s32.totalorder %s181, %s183
      %p187 = scmp.eq.s32.totalorder %s18, 0
      %p188 = por %p186, %p187
      %p189 = scmp.ne.s32.totalorder %s181, %s183
      %p190 = scmp.eq.s32.totalorder %s23, 1
      %p191 = por %p189, %p190
      %p192 = scmp.ne.s32.totalorder %s183, %s184
      %p193 = scmp.eq.s32.totalorder %s23, 0
      %p194 = por %p192, %p193
      %p195 = scmp.ne.s32.totalorder %s183, %s184
      %p196 = scmp.eq.s32.totalorder %s24, 1
      %p197 = por %p195, %p196
      %p199 = scmp.ne.s32.totalorder %s184, %s198
      %p200 = scmp.eq.s32.totalorder %s24, 0
      %p201 = por %p199, %p200
      %s202 = ssub.s32 %s25, %s37
      %s203 = ssub.s32 %s26, %s33
      %s204 = sor.u32 %s202, %s203
      %p205 = scmp.eq.s32.totalorder %s204, 0
      %s207 = sadd.s32 %s206, 1
      %s208 = scalar_select %p205, %s206, %s207
      %p211 = pneg %p205
      %p212 = scmp.eq.s32.totalorder %s18, 1
      %p213 = por %p211, %p212
      %p214 = scmp.ne.s32.totalorder %s206, %s209
      %p215 = scmp.eq.s32.totalorder %s18, 0
      %p216 = por %p214, %p215
      %p217 = scmp.ne.s32.totalorder %s206, %s209
      %p218 = scmp.eq.s32.totalorder %s23, 1
      %p219 = por %p217, %p218
      %p220 = scmp.ne.s32.totalorder %s209, %s210
      %p221 = scmp.eq.s32.totalorder %s23, 0
      %p222 = por %p220, %p221
      %p223 = scmp.ne.s32.totalorder %s209, %s210
      %p224 = scmp.eq.s32.totalorder %s24, 1
      %p225 = por %p223, %p224
      %p227 = scmp.ne.s32.totalorder %s210, %s226
      %p228 = scmp.eq.s32.totalorder %s24, 0
      %p229 = por %p227, %p228
      %s230 = ssub.s32 %s25, %s37
      %s231 = ssub.s32 %s26, %s33
      %s232 = sor.u32 %s230, %s231
      %p233 = scmp.eq.s32.totalorder %s232, 0
      %s235 = sadd.s32 %s234, 1
      %s236 = scalar_select %p233, %s234, %s235
      %p239 = pneg %p233
      %p240 = scmp.eq.s32.totalorder %s18, 1
      %p241 = por %p239, %p240
      %p242 = scmp.ne.s32.totalorder %s234, %s237
      %p243 = scmp.eq.s32.totalorder %s18, 0
      %p244 = por %p242, %p243
      %p245 = scmp.ne.s32.totalorder %s234, %s237
      %p246 = scmp.eq.s32.totalorder %s23, 1
      %p247 = por %p245, %p246
      %p248 = scmp.ne.s32.totalorder %s237, %s238
      %p249 = scmp.eq.s32.totalorder %s23, 0
      %p250 = por %p248, %p249
      %p251 = scmp.ne.s32.totalorder %s237, %s238
      %p252 = scmp.eq.s32.totalorder %s24, 1
      %p253 = por %p251, %p252
      %p255 = scmp.ne.s32.totalorder %s238, %s254
      %p256 = scmp.eq.s32.totalorder %s24, 0
      %p257 = por %p255, %p256
      %p258 = scmp.le.s32.totalorder 1, %s18
      %p259 = scmp.lt.s32.totalorder %s18, 3
      %p260 = pnand %p258, %p259
      %p261 = pneg %p260
      // Predicated region
      $region9: #{tpu_custom_call.1} parent=5 // pred_check
        _
      $region10: #{tpu_custom_call.1} parent=5 // pred_check_branch
        %263 = sbr.rel (%p260) target = $region12
      $region11: #{tpu_custom_call.1} parent=5 // pred_region
        %s264 = ssub.s32 %s18, 1
        // Predicated region
        $region13: #{tpu_custom_call.1} parent=11 // pred_check
          %p265 = pneg %p131
        $region14: #{tpu_custom_call.1} parent=11 // pred_check_branch
          %267 = sbr.rel (%p265) target = $region16
        $region15: #{tpu_custom_call.1} parent=11 // pred_region
          _
        $region16: #{tpu_custom_call.1} parent=11 // pred_fallthru
          _
        // Predicated region
        $region17: #{tpu_custom_call.1} parent=11 // pred_check
          %p268 = pneg %p152
        $region18: #{tpu_custom_call.1} parent=11 // pred_check_branch
          %270 = sbr.rel (%p268) target = $region20
        $region19: #{tpu_custom_call.1} parent=11 // pred_region
          _
        $region20: #{tpu_custom_call.1} parent=11 // pred_fallthru
          _
        // Predicated region
        $region21: #{tpu_custom_call.1} parent=11 // pred_check
          %p271 = pneg %p173
        $region22: #{tpu_custom_call.1} parent=11 // pred_check_branch
          %273 = sbr.rel (%p271) target = $region24
        $region23: #{tpu_custom_call.1} parent=11 // pred_region
          _
        $region24: #{tpu_custom_call.1} parent=11 // pred_fallthru
          _
        // Predicated region
        $region25: #{tpu_custom_call.1} parent=11 // pred_check
          %p274 = pneg %p194
        $region26: #{tpu_custom_call.1} parent=11 // pred_check_branch
          %276 = sbr.rel (%p274) target = $region28
        $region27: #{tpu_custom_call.1} parent=11 // pred_region
          _
        $region28: #{tpu_custom_call.1} parent=11 // pred_fallthru
          _
      $region12: #{tpu_custom_call.1} parent=5 // pred_fallthru
        _
      %p277 = scmp.lt.s32.totalorder %s18, 2
      // Predicated region
      $region29: #{tpu_custom_call.1} parent=5 // pred_check
        %p278 = pneg %p277
      $region30: #{tpu_custom_call.1} parent=5 // pred_check_branch
        %280 = sbr.rel (%p278) target = $region32
      $region31: #{tpu_custom_call.1} parent=5 // pred_region
        // Predicated region
        $region33: #{tpu_custom_call.1} parent=31 // pred_check
          %p281 = pneg %p52
        $region34: #{tpu_custom_call.1} parent=31 // pred_check_branch
          %283 = sbr.rel (%p281) target = $region36
        $region35: #{tpu_custom_call.1} parent=31 // pred_region
          %p284 = scmp.lt.s32.totalorder %s25, 1
          %s285 = scalar_select %p284, %s25, 1
          %p286 = scmp.lt.s32.totalorder %s26, 0
          %s287 = scalar_select %p286, %s26, 0
          %s288 = smul.addr %s285, 8
          %s289 = sadd.s32 %s287, %s288
          %s290 = smul.addr %s289, 8
          %s291 = scalar_lea.vmem %s0, %s290
        $region36: #{tpu_custom_call.1} parent=31 // pred_fallthru
          _
        // Predicated region
        $region37: #{tpu_custom_call.1} parent=31 // pred_check
          %p292 = pneg %p78
        $region38: #{tpu_custom_call.1} parent=31 // pred_check_branch
          %294 = sbr.rel (%p292) target = $region40
        $region39: #{tpu_custom_call.1} parent=31 // pred_region
          %p295 = scmp.lt.s32.totalorder %s25, 1
          %s296 = scalar_select %p295, %s25, 1
          %s297 = smul.addr %s296, 8
          %s298 = smul.addr %s297, 8
          %s299 = scalar_lea.vmem %s1, %s298
        $region40: #{tpu_custom_call.1} parent=31 // pred_fallthru
          _
        // Predicated region
        $region41: #{tpu_custom_call.1} parent=31 // pred_check
          %p300 = pneg %p104
        $region42: #{tpu_custom_call.1} parent=31 // pred_check_branch
          %302 = sbr.rel (%p300) target = $region44
        $region43: #{tpu_custom_call.1} parent=31 // pred_region
          %p303 = scmp.lt.s32.totalorder %s25, 1
          %s304 = scalar_select %p303, %s25, 1
          %s305 = smul.addr %s304, 8
          %s306 = smul.addr %s305, 8
          %s307 = scalar_lea.vmem %s2, %s306
        $region44: #{tpu_custom_call.1} parent=31 // pred_fallthru
          _
      $region32: #{tpu_custom_call.1} parent=5 // pred_fallthru
        _
      %p308 = scmp.le.s32.totalorder 1, %s18
      %p309 = scmp.lt.s32.totalorder %s18, 3
      %p310 = pnand %p308, %p309
      %p311 = pneg %p310
      // Predicated region
      $region45: #{tpu_custom_call.1} parent=5 // pred_check
        _
      $region46: #{tpu_custom_call.1} parent=5 // pred_check_branch
        %313 = sbr.rel (%p310) target = $region48
      $region47: #{tpu_custom_call.1} parent=5 // pred_region
        %s314 = ssub.s32 %s18, 1
        %p315 = scmp.lt.s32.totalorder %s27, 1
        %s316 = scalar_select %p315, %s27, 1
        %p317 = scmp.lt.s32.totalorder %s28, 0
        %s318 = scalar_select %p317, %s28, 0
        %s319 = smul.addr %s316, 8
        %s320 = sadd.s32 %s318, %s319
        %s321 = smul.addr %s320, 8
        %s322 = scalar_lea.vmem %s0, %s321
        %p323 = pneg %p58
        %p324 = pneg %p55
        %p325 = scmp.lt.s32.totalorder %s27, 1
        %s326 = scalar_select %p325, %s27, 1
        %s327 = smul.addr %s326, 8
        %s328 = smul.addr %s327, 8
        %s329 = scalar_lea.vmem %s1, %s328
        %p330 = pneg %p84
        %p331 = pneg %p81
        %p332 = scmp.lt.s32.totalorder %s27, 1
        %s333 = scalar_select %p332, %s27, 1
        %s334 = smul.addr %s333, 8
        %s335 = smul.addr %s334, 8
        %s336 = scalar_lea.vmem %s2, %s335
        %p337 = pneg %p110
        %p338 = pneg %p107
        %p339 = pneg %p131
        %p340 = pneg %p128
        %p341 = pneg %p152
        %p342 = pneg %p149
        %p343 = pneg %p173
        %p344 = pneg %p170
        %p345 = pneg %p194
        %p346 = pneg %p191
        %p347 = pneg %p222
        %p348 = pneg %p219
        %s349 = sand.u32 %s209, 1
        %s350 = scalar_lea.sflag [#allocation3], %s349
        %s351 = sand.u32 %s209, 1
        %s352 = smul.addr %s351, 64
        %s353 = scalar_lea.vmem [#allocation2], %s352
        %p354 = pneg %p250
        %p355 = pneg %p247
        %s356 = smul.u32 16, %s28
        %p357 = scmp.lt.s32.totalorder %s27, 1
        %s358 = scalar_select %p357, %s27, 1
        %p359 = scmp.lt.s32.totalorder %s356, 15
        %s360 = scalar_select %p359, %s356, 15
        %s361 = smul.addr %s358, 16
        %s362 = sadd.s32 %s360, %s361
        %s363 = smul.addr %s362, 8
        %s364 = scalar_lea.vmem %s8, %s363
        %p365 = scmp.lt.s32.totalorder %s27, 1
        %s366 = scalar_select %p365, %s27, 1
        %p367 = scmp.lt.s32.totalorder %s28, 0
        %s368 = scalar_select %p367, %s28, 0
        %s369 = smul.addr %s366, 8
        %s370 = sadd.s32 %s368, %s369
        %s371 = smul.addr %s370, 8
        %s372 = scalar_lea.vmem %s0, %s371
        %p373 = scmp.lt.s32.totalorder %s27, 1
        %s374 = scalar_select %p373, %s27, 1
        %s375 = smul.addr %s374, 8
        %s376 = smul.addr %s375, 8
        %s377 = scalar_lea.vmem %s1, %s376
        %p378 = scmp.lt.s32.totalorder %s27, 1
        %s379 = scalar_select %p378, %s27, 1
        %s380 = smul.addr %s379, 8
        %s381 = smul.addr %s380, 8
        %s382 = scalar_lea.vmem %s2, %s381
        %s383 = smul.u32 16, %s28
        %p384 = scmp.lt.s32.totalorder %s27, 1
        %s385 = scalar_select %p384, %s27, 1
        %p386 = scmp.lt.s32.totalorder %s383, 15
        %s387 = scalar_select %p386, %s383, 15
        %s388 = smul.addr %s385, 16
        %s389 = sadd.s32 %s387, %s388
        %s390 = smul.addr %s389, 8
        %s391 = scalar_lea.vmem %s8, %s390
        %s392 = smul.u32 16, %s28
        %v393 = vld [vmem:[%s372] sm:$0xff]
        %v394 = vld [vmem:[%s372 + $0x8] sm:$0xff]
        %v395 = vld [vmem:[%s372 + $0x10] sm:$0xff]
        %v396 = vld [vmem:[%s372 + $0x18] sm:$0xff]
        %v397 = vld [vmem:[%s372 + $0x20] sm:$0xff]
        %v398 = vld [vmem:[%s372 + $0x28] sm:$0xff]
        %v399 = vld [vmem:[%s372 + $0x30] sm:$0xff]
        %v400 = vld [vmem:[%s372 + $0x38] sm:$0xff]
        %v401 = vld [vmem:[%s377] sm:$0xff]
        %v402 = vld [vmem:[%s377 + $0x8] sm:$0xff]
        %v403 = vld [vmem:[%s377 + $0x10] sm:$0xff]
        %v404 = vld [vmem:[%s377 + $0x18] sm:$0xff]
        %v405 = vld [vmem:[%s377 + $0x20] sm:$0xff]
        %v406 = vld [vmem:[%s377 + $0x28] sm:$0xff]
        %v407 = vld [vmem:[%s377 + $0x30] sm:$0xff]
        %v408 = vld [vmem:[%s377 + $0x38] sm:$0xff]
        %410 = vset.pattern.permute.xlu0 0
        %411 = vperm.xlu0 %410, %v401
        %v412 = vpop.permute.xlu0 %411
        %415 = vset.pattern.permute.xlu0 0
        %416 = vperm.xlu0 %415, %v402
        %v417 = vpop.permute.xlu0 %416
        %420 = vset.pattern.permute.xlu0 0
        %421 = vperm.xlu0 %420, %v403
        %v422 = vpop.permute.xlu0 %421
        %425 = vset.pattern.permute.xlu0 0
        %426 = vperm.xlu0 %425, %v404
        %v427 = vpop.permute.xlu0 %426
        %430 = vset.pattern.permute.xlu0 0
        %431 = vperm.xlu0 %430, %v405
        %v432 = vpop.permute.xlu0 %431
        %435 = vset.pattern.permute.xlu0 0
        %436 = vperm.xlu0 %435, %v406
        %v437 = vpop.permute.xlu0 %436
        %440 = vset.pattern.permute.xlu0 0
        %441 = vperm.xlu0 %440, %v407
        %v442 = vpop.permute.xlu0 %441
        %445 = vset.pattern.permute.xlu0 0
        %446 = vperm.xlu0 %445, %v408
        %v447 = vpop.permute.xlu0 %446
        %v449 = vmul.f32 %v393, %v412
        %v450 = vmul.f32 %v394, %v417
        %v451 = vmul.f32 %v395, %v422
        %v452 = vmul.f32 %v396, %v427
        %v453 = vmul.f32 %v397, %v432
        %v454 = vmul.f32 %v398, %v437
        %v455 = vmul.f32 %v399, %v442
        %v456 = vmul.f32 %v400, %v447
        %v457 = vld [vmem:[%s382] sm:$0xff]
        %v458 = vld [vmem:[%s382 + $0x8] sm:$0xff]
        %v459 = vld [vmem:[%s382 + $0x10] sm:$0xff]
        %v460 = vld [vmem:[%s382 + $0x18] sm:$0xff]
        %v461 = vld [vmem:[%s382 + $0x20] sm:$0xff]
        %v462 = vld [vmem:[%s382 + $0x28] sm:$0xff]
        %v463 = vld [vmem:[%s382 + $0x30] sm:$0xff]
        %v464 = vld [vmem:[%s382 + $0x38] sm:$0xff]
        %466 = vset.pattern.permute.xlu0 0
        %467 = vperm.xlu0 %466, %v457
        %v468 = vpop.permute.xlu0 %467
        %471 = vset.pattern.permute.xlu0 0
        %472 = vperm.xlu0 %471, %v458
        %v473 = vpop.permute.xlu0 %472
        %476 = vset.pattern.permute.xlu0 0
        %477 = vperm.xlu0 %476, %v459
        %v478 = vpop.permute.xlu0 %477
        %481 = vset.pattern.permute.xlu0 0
        %482 = vperm.xlu0 %481, %v460
        %v483 = vpop.permute.xlu0 %482
        %486 = vset.pattern.permute.xlu0 0
        %487 = vperm.xlu0 %486, %v461
        %v488 = vpop.permute.xlu0 %487
        %491 = vset.pattern.permute.xlu0 0
        %492 = vperm.xlu0 %491, %v462
        %v493 = vpop.permute.xlu0 %492
        %496 = vset.pattern.permute.xlu0 0
        %497 = vperm.xlu0 %496, %v463
        %v498 = vpop.permute.xlu0 %497
        %501 = vset.pattern.permute.xlu0 0
        %502 = vperm.xlu0 %501, %v464
        %v503 = vpop.permute.xlu0 %502
        %v505 = vadd.f32 %v449, %v468
        %v506 = vadd.f32 %v450, %v473
        %v507 = vadd.f32 %v451, %v478
        %v508 = vadd.f32 %v452, %v483
        %v509 = vadd.f32 %v453, %v488
        %v510 = vadd.f32 %v454, %v493
        %v511 = vadd.f32 %v455, %v498
        %v512 = vadd.f32 %v456, %v503
        %v513 = vld [vmem:[%s3] sm:$0xff]
        %v514 = vld [vmem:[%s3 + $0x8] sm:$0xff]
        %v515 = vld [vmem:[%s3 + $0x10] sm:$0xff]
        %v516 = vld [vmem:[%s3 + $0x18] sm:$0xff]
        %v517 = vld [vmem:[%s3 + $0x20] sm:$0xff]
        %v518 = vld [vmem:[%s3 + $0x28] sm:$0xff]
        %v519 = vld [vmem:[%s3 + $0x30] sm:$0xff]
        %v520 = vld [vmem:[%s3 + $0x38] sm:$0xff]
        %v521 = vld [vmem:[%s4] sm:$0xff]
        %v522 = vld [vmem:[%s4 + $0x8] sm:$0xff]
        %v523 = vld [vmem:[%s4 + $0x10] sm:$0xff]
        %v524 = vld [vmem:[%s4 + $0x18] sm:$0xff]
        %v525 = vld [vmem:[%s4 + $0x20] sm:$0xff]
        %v526 = vld [vmem:[%s4 + $0x28] sm:$0xff]
        %v527 = vld [vmem:[%s4 + $0x30] sm:$0xff]
        %v528 = vld [vmem:[%s4 + $0x38] sm:$0xff]
        %530 = vset.pattern.permute.xlu0 0
        %531 = vperm.xlu0 %530, %v521
        %v532 = vpop.permute.xlu0 %531
        %535 = vset.pattern.permute.xlu0 0
        %536 = vperm.xlu0 %535, %v522
        %v537 = vpop.permute.xlu0 %536
        %540 = vset.pattern.permute.xlu0 0
        %541 = vperm.xlu0 %540, %v523
        %v542 = vpop.permute.xlu0 %541
        %545 = vset.pattern.permute.xlu0 0
        %546 = vperm.xlu0 %545, %v524
        %v547 = vpop.permute.xlu0 %546
        %550 = vset.pattern.permute.xlu0 0
        %551 = vperm.xlu0 %550, %v525
        %v552 = vpop.permute.xlu0 %551
        %555 = vset.pattern.permute.xlu0 0
        %556 = vperm.xlu0 %555, %v526
        %v557 = vpop.permute.xlu0 %556
        %560 = vset.pattern.permute.xlu0 0
        %561 = vperm.xlu0 %560, %v527
        %v562 = vpop.permute.xlu0 %561
        %565 = vset.pattern.permute.xlu0 0
        %566 = vperm.xlu0 %565, %v528
        %v567 = vpop.permute.xlu0 %566
        %vm569 = vcmask 523264
        %v571 = vsel %vm569, %v513, 0
        %v574 = vsel %vm569, %v514, 0
        %v577 = vsel %vm569, %v515, 0
        %v580 = vsel %vm569, %v516, 0
        %v583 = vsel %vm569, %v517, 0
        %v586 = vsel %vm569, %v518, 0
        %v589 = vsel %vm569, %v519, 0
        %v592 = vsel %vm569, %v520, 0
        %594 = vmatpush.msra.mxu0 0.0
        %595 = vmatpush.msra.mxu0 0.0
        %596 = vmatpush.msra.mxu0 0.0
        %597 = vmatpush.msra.mxu0 0.0
        %598 = vmatpush.msra.mxu0 0.0
        %599 = vmatpush.msra.mxu0 0.0
        %600 = vmatpush.msra.mxu0 0.0
        %601 = vmatpush.msra.mxu0 0.0
        %602 = vmatpush.msra.mxu0 %v512
        %603 = vmatpush.msra.mxu0 %v511
        %604 = vmatpush.msra.mxu0 %v510
        %605 = vmatpush.msra.mxu0 %v509
        %606 = vmatpush.msra.mxu0 %v508
        %607 = vmatpush.msra.mxu0 %v507
        %608 = vmatpush.msra.mxu0 %v506
        %609 = vmatpush.msra.mxu0 %v505
        %610 = vmatmul.f32.gmra.mxu0 %v571
        %v611 = vpop.f32.mrf.mxu0
        %v612 = vadd.f32 %v532, %v611
        %613 = vmatmul.f32.gmra.mxu0 %v574
        %v614 = vpop.f32.mrf.mxu0
        %v615 = vadd.f32 %v537, %v614
        %616 = vmatmul.f32.gmra.mxu0 %v577
        %v617 = vpop.f32.mrf.mxu0
        %v618 = vadd.f32 %v542, %v617
        %619 = vmatmul.f32.gmra.mxu0 %v580
        %v620 = vpop.f32.mrf.mxu0
        %v621 = vadd.f32 %v547, %v620
        %622 = vmatmul.f32.gmra.mxu0 %v583
        %v623 = vpop.f32.mrf.mxu0
        %v624 = vadd.f32 %v552, %v623
        %625 = vmatmul.f32.gmra.mxu0 %v586
        %v626 = vpop.f32.mrf.mxu0
        %v627 = vadd.f32 %v557, %v626
        %628 = vmatmul.f32.gmra.mxu0 %v589
        %v629 = vpop.f32.mrf.mxu0
        %v630 = vadd.f32 %v562, %v629
        %631 = vmatmul.f32.gmra.mxu0 %v592
        %v632 = vpop.f32.mrf.mxu0
        %v633 = vadd.f32 %v567, %v632
        %634 = vdwg.mxu0
        %v635 = vld [vmem:[%s5] sm:$0xff]
        %v636 = vld [vmem:[%s5 + $0x8] sm:$0xff]
        %v637 = vld [vmem:[%s5 + $0x10] sm:$0xff]
        %v638 = vld [vmem:[%s5 + $0x18] sm:$0xff]
        %v639 = vld [vmem:[%s5 + $0x20] sm:$0xff]
        %v640 = vld [vmem:[%s5 + $0x28] sm:$0xff]
        %v641 = vld [vmem:[%s5 + $0x30] sm:$0xff]
        %v642 = vld [vmem:[%s5 + $0x38] sm:$0xff]
        %v643 = vld [vmem:[%s6] sm:$0x1]
        %v645 = vperm.slane %v643, 0
        %647 = vxpose.xlu0.b32.start [1/16] %v505, 128
        %648 = vxpose.xlu0.b32.cont [2/16] %v506, 128
        %649 = vxpose.xlu0.b32.cont [3/16] %v507, 128
        %650 = vxpose.xlu0.b32.cont [4/16] %v508, 128
        %651 = vxpose.xlu0.b32.cont [5/16] %v509, 128
        %652 = vxpose.xlu0.b32.cont [6/16] %v510, 128
        %653 = vxpose.xlu0.b32.cont [7/16] %v511, 128
        %654 = vxpose.xlu0.b32.cont [8/16] %v512, 128
        %655 = vxpose.xlu0.b32.cont [9/16] 0.0, 128
        %656 = vxpose.xlu0.b32.cont [10/16] 0.0, 128
        %657 = vxpose.xlu0.b32.cont [11/16] 0.0, 128
        %658 = vxpose.xlu0.b32.cont [12/16] 0.0, 128
        %659 = vxpose.xlu0.b32.cont [13/16] 0.0, 128
        %660 = vxpose.xlu0.b32.cont [14/16] 0.0, 128
        %661 = vxpose.xlu0.b32.cont [15/16] 0.0, 128
        %662 = vxpose.xlu0.b32.end [16/16] 0.0, 128
        %v663 = vpop.trf.xlu0
        %v664 = vpop.trf.xlu0
        %v665 = vpop.trf.xlu0
        %v666 = vpop.trf.xlu0
        %v667 = vpop.trf.xlu0
        %v668 = vpop.trf.xlu0
        %v669 = vpop.trf.xlu0
        %v670 = vpop.trf.xlu0
        %v671 = vpop.trf.xlu0
        %v672 = vpop.trf.xlu0
        %v673 = vpop.trf.xlu0
        %v674 = vpop.trf.xlu0
        %v675 = vpop.trf.xlu0
        %v676 = vpop.trf.xlu0
        %v677 = vpop.trf.xlu0
        %v678 = vpop.trf.xlu0
        %v680 = vsel %vm569, %v663, 0
        %v683 = vsel %vm569, %v664, 0
        %v686 = vsel %vm569, %v665, 0
        %v689 = vsel %vm569, %v666, 0
        %v692 = vsel %vm569, %v667, 0
        %v695 = vsel %vm569, %v668, 0
        %v698 = vsel %vm569, %v669, 0
        %v701 = vsel %vm569, %v670, 0
        %v704 = vsel %vm569, %v671, 0
        %v707 = vsel %vm569, %v672, 0
        %v710 = vsel %vm569, %v673, 0
        %v713 = vsel %vm569, %v674, 0
        %v716 = vsel %vm569, %v675, 0
        %v719 = vsel %vm569, %v676, 0
        %v722 = vsel %vm569, %v677, 0
        %v725 = vsel %vm569, %v678, 0
        %727 = vmatpush.msra.mxu0 0.0
        %728 = vmatpush.msra.mxu0 0.0
        %729 = vmatpush.msra.mxu0 0.0
        %730 = vmatpush.msra.mxu0 0.0
        %731 = vmatpush.msra.mxu0 0.0
        %732 = vmatpush.msra.mxu0 0.0
        %733 = vmatpush.msra.mxu0 0.0
        %734 = vmatpush.msra.mxu0 0.0
        %735 = vmatpush.msra.mxu0 %v642
        %736 = vmatpush.msra.mxu0 %v641
        %737 = vmatpush.msra.mxu0 %v640
        %738 = vmatpush.msra.mxu0 %v639
        %739 = vmatpush.msra.mxu0 %v638
        %740 = vmatpush.msra.mxu0 %v637
        %741 = vmatpush.msra.mxu0 %v636
        %742 = vmatpush.msra.mxu0 %v635
        %743 = vmatmul.f32.gmra.mxu0 %v680
        %v744 = vpop.f32.mrf.mxu0
        %v745 = vadd.f32 %v645, %v744
        %746 = vmatmul.f32.gmra.mxu0 %v683
        %v747 = vpop.f32.mrf.mxu0
        %v748 = vadd.f32 %v645, %v747
        %749 = vmatmul.f32.gmra.mxu0 %v686
        %v750 = vpop.f32.mrf.mxu0
        %v751 = vadd.f32 %v645, %v750
        %752 = vmatmul.f32.gmra.mxu0 %v689
        %v753 = vpop.f32.mrf.mxu0
        %v754 = vadd.f32 %v645, %v753
        %755 = vmatmul.f32.gmra.mxu0 %v692
        %v756 = vpop.f32.mrf.mxu0
        %v757 = vadd.f32 %v645, %v756
        %758 = vmatmul.f32.gmra.mxu0 %v695
        %v759 = vpop.f32.mrf.mxu0
        %v760 = vadd.f32 %v645, %v759
        %761 = vmatmul.f32.gmra.mxu0 %v698
        %v762 = vpop.f32.mrf.mxu0
        %v763 = vadd.f32 %v645, %v762
        %764 = vmatmul.f32.gmra.mxu0 %v701
        %v765 = vpop.f32.mrf.mxu0
        %v766 = vadd.f32 %v645, %v765
        %767 = vmatmul.f32.gmra.mxu0 %v704
        %v768 = vpop.f32.mrf.mxu0
        %v769 = vadd.f32 %v645, %v768
        %770 = vmatmul.f32.gmra.mxu0 %v707
        %v771 = vpop.f32.mrf.mxu0
        %v772 = vadd.f32 %v645, %v771
        %773 = vmatmul.f32.gmra.mxu0 %v710
        %v774 = vpop.f32.mrf.mxu0
        %v775 = vadd.f32 %v645, %v774
        %776 = vmatmul.f32.gmra.mxu0 %v713
        %v777 = vpop.f32.mrf.mxu0
        %v778 = vadd.f32 %v645, %v777
        %779 = vmatmul.f32.gmra.mxu0 %v716
        %v780 = vpop.f32.mrf.mxu0
        %v781 = vadd.f32 %v645, %v780
        %782 = vmatmul.f32.gmra.mxu0 %v719
        %v783 = vpop.f32.mrf.mxu0
        %v784 = vadd.f32 %v645, %v783
        %785 = vmatmul.f32.gmra.mxu0 %v722
        %v786 = vpop.f32.mrf.mxu0
        %v787 = vadd.f32 %v645, %v786
        %788 = vmatmul.f32.gmra.mxu0 %v725
        %v789 = vpop.f32.mrf.mxu0
        %v790 = vadd.f32 %v645, %v789
        %791 = vdwg.mxu0
        %792 = vst [vmem:[%s353] sm:$0xff] %v612
        %793 = vst [vmem:[%s353 + $0x8] sm:$0xff] %v615
        %794 = vst [vmem:[%s353 + $0x10] sm:$0xff] %v618
        %795 = vst [vmem:[%s353 + $0x18] sm:$0xff] %v621
        %796 = vst [vmem:[%s353 + $0x20] sm:$0xff] %v624
        %797 = vst [vmem:[%s353 + $0x28] sm:$0xff] %v627
        %798 = vst [vmem:[%s353 + $0x30] sm:$0xff] %v630
        %799 = vst [vmem:[%s353 + $0x38] sm:$0xff] %v633
        %800 = vst.msk [vmem:[%s391] sm:$0xff] %vm569, %v745
        %801 = vst.msk [vmem:[%s391 + $0x8] sm:$0xff] %vm569, %v748
        %802 = vst.msk [vmem:[%s391 + $0x10] sm:$0xff] %vm569, %v751
        %803 = vst.msk [vmem:[%s391 + $0x18] sm:$0xff] %vm569, %v754
        %804 = vst.msk [vmem:[%s391 + $0x20] sm:$0xff] %vm569, %v757
        %805 = vst.msk [vmem:[%s391 + $0x28] sm:$0xff] %vm569, %v760
        %806 = vst.msk [vmem:[%s391 + $0x30] sm:$0xff] %vm569, %v763
        %807 = vst.msk [vmem:[%s391 + $0x38] sm:$0xff] %vm569, %v766
        %808 = vst.msk [vmem:[%s391 + $0x40] sm:$0xff] %vm569, %v769
        %809 = vst.msk [vmem:[%s391 + $0x48] sm:$0xff] %vm569, %v772
        %810 = vst.msk [vmem:[%s391 + $0x50] sm:$0xff] %vm569, %v775
        %811 = vst.msk [vmem:[%s391 + $0x58] sm:$0xff] %vm569, %v778
        %812 = vst.msk [vmem:[%s391 + $0x60] sm:$0xff] %vm569, %v781
        %813 = vst.msk [vmem:[%s391 + $0x68] sm:$0xff] %vm569, %v784
        %814 = vst.msk [vmem:[%s391 + $0x70] sm:$0xff] %vm569, %v787
        %815 = vst.msk [vmem:[%s391 + $0x78] sm:$0xff] %vm569, %v790
        %s816 = sand.u32 %s209, 1
        %s817 = scalar_lea.sflag [#allocation3], %s816
        %s818 = sand.u32 %s209, 1
        %s819 = smul.addr %s818, 64
        %s820 = scalar_lea.vmem [#allocation2], %s819
        %s821 = smul.u32 16, %s28
        %p822 = scmp.lt.s32.totalorder %s27, 1
        %s823 = scalar_select %p822, %s27, 1
        %p824 = scmp.lt.s32.totalorder %s821, 15
        %s825 = scalar_select %p824, %s821, 15
        %s826 = smul.addr %s823, 16
        %s827 = sadd.s32 %s825, %s826
        %s828 = smul.addr %s827, 8
        %s829 = scalar_lea.vmem %s8, %s828
        // Predicated region
        $region49: #{tpu_custom_call.1} parent=47 // pred_check
          %p830 = pneg %p219
        $region50: #{tpu_custom_call.1} parent=47 // pred_check_branch
          %832 = sbr.rel (%p830) target = $region52
        $region51: #{tpu_custom_call.1} parent=47 // pred_region
          %834 = vsyncadd %s817, 0
          %s835 = smul.addr %s27, 8
          %s836 = sadd.s32 %s28, %s835
          %s837 = smul.addr %s836, 8
          %s838 = scalar_lea.hbm %s7, %s837
          %s839 = sshll.u32 %s820, 4
          %s840 = int_to_ptr.vmem [resolvable:$true] %s839
          %s841 = sshll.u32 %s838, 4
          %s842 = int_to_ptr.hbm [resolvable:$true] %s841
          %847 = dma.vmem_to_hbm [thread:$0]  %s840, 1024, %s842, %s817, 128, 128, 8
        $region52: #{tpu_custom_call.1} parent=47 // pred_fallthru
          _
        // Predicated region
        $region53: #{tpu_custom_call.1} parent=47 // pred_check
          %p848 = pneg %p247
        $region54: #{tpu_custom_call.1} parent=47 // pred_check_branch
          %850 = sbr.rel (%p848) target = $region56
        $region55: #{tpu_custom_call.1} parent=47 // pred_region
          %s851 = smul.u32 16, %s28
        $region56: #{tpu_custom_call.1} parent=47 // pred_fallthru
          _
      $region48: #{tpu_custom_call.1} parent=5 // pred_fallthru
        _
      %p852 = scmp.le.s32.totalorder 2, %s18
      // Predicated region
      $region57: #{tpu_custom_call.1} parent=5 // pred_check
        %p853 = pneg %p852
      $region58: #{tpu_custom_call.1} parent=5 // pred_check_branch
        %855 = sbr.rel (%p853) target = $region60
      $region59: #{tpu_custom_call.1} parent=5 // pred_region
        %s856 = ssub.s32 %s18, 2
        // Predicated region
        $region61: #{tpu_custom_call.1} parent=59 // pred_check
          %p857 = pneg %p225
        $region62: #{tpu_custom_call.1} parent=59 // pred_check_branch
          %859 = sbr.rel (%p857) target = $region64
        $region63: #{tpu_custom_call.1} parent=59 // pred_region
          %s860 = sand.u32 %s210, 1
          %s861 = scalar_lea.sflag [#allocation3], %s860
          %s862 = sand.u32 %s210, 1
          %s863 = smul.addr %s862, 64
          %s864 = scalar_lea.vmem [#allocation2], %s863
          %866 = dma.done %s861, 1024
        $region64: #{tpu_custom_call.1} parent=59 // pred_fallthru
          _
        // Predicated region
        $region65: #{tpu_custom_call.1} parent=59 // pred_check
          %p867 = pneg %p253
        $region66: #{tpu_custom_call.1} parent=59 // pred_check_branch
          %869 = sbr.rel (%p867) target = $region68
        $region67: #{tpu_custom_call.1} parent=59 // pred_region
          %s870 = smul.u32 16, %s30
          %p871 = scmp.lt.s32.totalorder %s29, 1
          %s872 = scalar_select %p871, %s29, 1
          %p873 = scmp.lt.s32.totalorder %s870, 15
          %s874 = scalar_select %p873, %s870, 15
          %s875 = smul.addr %s872, 16
          %s876 = sadd.s32 %s874, %s875
          %s877 = smul.addr %s876, 8
          %s878 = scalar_lea.vmem %s8, %s877
        $region68: #{tpu_custom_call.1} parent=59 // pred_fallthru
          _
      $region60: #{tpu_custom_call.1} parent=5 // pred_fallthru
        _
    $region6: #{tpu_custom_call.1} parent=1 // loop_footer
      %s22 = sadd.s32 1, %s18
    $region7: #{tpu_custom_call.1} parent=1 // loop_footer_branch
      %17 = sbr.rel target = $region3
    $region8: #{tpu_custom_call.1} parent=1 // loop_exit
      _
    %879 = vsyncpa [#allocation3], 1
    %s880 = scalar_lea.sflag [#allocation3], 1
    %881 = vsyncpa %s880, 1

</llo_original>
